<compile_context>
chip_gen: v7x
topology: tpu7x:2x2x1
jax: 0.10.0
libtpu: 0.0.40
codegen_flags: <defaults>
</compile_context>

<pallas_src>
import math

import jax
import jax.numpy as jnp
import numpy as np
from jax import lax
from jax.experimental import pallas as pl
from jax.experimental.pallas import tpu as pltpu


def _pick_tile(dim, target):
    """Largest aligned tile <= target that evenly divides dim, else full dim."""
    for t in (target, target // 2, 256, 128):
        if 0 < t <= dim and dim % t == 0:
            return t
    return dim


# ----------------------------------------------------------------------------
# Plain tiled projection matmul:  y = x @ W.T  with W in (out, in) layout
# ----------------------------------------------------------------------------
def _matmul_nt_kernel(x_ref, w_ref, o_ref, acc_ref):
    @pl.when(pl.program_id(2) == 0)
    def _init():
        acc_ref[...] = jnp.zeros_like(acc_ref)

    # Contract last dim of x with last dim of w (i.e. x @ w.T) so the weight is
    # read in its natural (N, K) layout — no HBM transpose in the wrapper.
    acc_ref[...] += lax.dot_general(
        x_ref[...], w_ref[...], (((1,), (1,)), ((), ())),
        preferred_element_type=jnp.float32)

    @pl.when(pl.program_id(2) == pl.num_programs(2) - 1)
    def _finalize():
        o_ref[...] = acc_ref[...].astype(o_ref.dtype)


def pallas_matmul_nt(x, w, *, tm=256, tn=256, tk=512, out_dtype=jnp.bfloat16):
    """x: (M, K) bf16, w: (N, K) bf16 (PyTorch Linear layout) -> (M, N) bf16."""
    M, K = x.shape
    N, Kw = w.shape
    assert K == Kw
    btm, btn, btk = _pick_tile(M, tm), _pick_tile(N, tn), _pick_tile(K, tk)
    grid = (M // btm, N // btn, K // btk)

    return pl.pallas_call(
        _matmul_nt_kernel,
        out_shape=jax.ShapeDtypeStruct((M, N), out_dtype),
        grid_spec=pltpu.PrefetchScalarGridSpec(
            num_scalar_prefetch=0,
            grid=grid,
            in_specs=[
                pl.BlockSpec((btm, btk), lambda i, j, k: (i, k)),
                pl.BlockSpec((btn, btk), lambda i, j, k: (j, k)),
            ],
            out_specs=pl.BlockSpec((btm, btn), lambda i, j, k: (i, j)),
            scratch_shapes=[pltpu.VMEM((btm, btn), jnp.float32)],
        ),
        compiler_params=pltpu.CompilerParams(
            dimension_semantics=("parallel", "parallel", "arbitrary"),
            vmem_limit_bytes=32 * 1024 * 1024,  # safe on v5e/v6e/v7x
        ),
    )(x, w)


# ----------------------------------------------------------------------------
# QKV projection matmul with fused rotate-half RoPE epilogue on q/k columns
# ----------------------------------------------------------------------------
def _make_qkv_rope_matmul_kernel(head_dim, num_qk_col_blocks):
    half = head_dim // 2

    def kernel(x_ref, w_ref, cos_ref, sin_ref, o_ref, acc_ref):
        @pl.when(pl.program_id(2) == 0)
        def _init():
            acc_ref[...] = jnp.zeros_like(acc_ref)

        acc_ref[...] += lax.dot_general(
            x_ref[...], w_ref[...], (((1,), (1,)), ((), ())),
            preferred_element_type=jnp.float32)

        is_last_k = pl.program_id(2) == pl.num_programs(2) - 1
        is_qk = pl.program_id(1) < num_qk_col_blocks

        # q/k column tiles: apply rotate-half RoPE in fp32, once, then cast.
        @pl.when(jnp.logical_and(is_last_k, is_qk))
        def _rope_store():
            cos2 = cos_ref[...]     # (btm, D) fp32: [cos, cos]
            sin2s = sin_ref[...]    # (btm, D) fp32: [-sin, sin] (sign folded)
            acc = acc_ref[...]
            btn = o_ref.shape[1]
            for hh in range(btn // head_dim):   # static unroll over heads in tile
                sl = slice(hh * head_dim, (hh + 1) * head_dim)
                t = acc[:, sl]
                o_ref[:, sl] = (t * cos2 + pltpu.roll(t, half, 1) * sin2s
                                ).astype(o_ref.dtype)

        # v column tiles: plain cast + store.
        @pl.when(jnp.logical_and(is_last_k, jnp.logical_not(is_qk)))
        def _plain_store():
            o_ref[...] = acc_ref[...].astype(o_ref.dtype)

    return kernel


def pallas_qkv_rope_matmul(x, w, cos2, sin2s, num_heads, head_dim, *,
                           tm=256, tk=512, out_dtype=jnp.bfloat16):
    """x: (M, H) bf16, w: (3H, H) bf16, cos2/sin2s: (M, D) fp32.
    Returns (M, 3H) bf16 with rotate-half RoPE already applied to q/k columns."""
    M, K = x.shape
    N, Kw = w.shape
    assert K == Kw
    H = num_heads * head_dim
    assert N == 3 * H

    # Column tile: must divide H and be a multiple of head_dim so the q/k <-> v
    # boundary and per-head rotation boundaries are tile-aligned.
    btn = head_dim
    for cand in (512, 256, 128):
        if cand <= H and H % cand == 0 and cand % head_dim == 0:
            btn = cand
            break
    btm = _pick_tile(M, tm)
    btk = _pick_tile(K, tk)
    grid = (M // btm, N // btn, K // btk)
    num_qk_col_blocks = (2 * H) // btn

    kernel = _make_qkv_rope_matmul_kernel(head_dim, num_qk_col_blocks)

    return pl.pallas_call(
        kernel,
        out_shape=jax.ShapeDtypeStruct((M, N), out_dtype),
        grid_spec=pltpu.PrefetchScalarGridSpec(
            num_scalar_prefetch=0,
            grid=grid,
            in_specs=[
                pl.BlockSpec((btm, btk), lambda i, j, k: (i, k)),
                pl.BlockSpec((btn, btk), lambda i, j, k: (j, k)),
                pl.BlockSpec((btm, head_dim), lambda i, j, k: (i, 0)),  # cos table
                pl.BlockSpec((btm, head_dim), lambda i, j, k: (i, 0)),  # sin table
            ],
            out_specs=pl.BlockSpec((btm, btn), lambda i, j, k: (i, j)),
            scratch_shapes=[pltpu.VMEM((btm, btn), jnp.float32)],
        ),
        compiler_params=pltpu.CompilerParams(
            dimension_semantics=("parallel", "parallel", "arbitrary"),
            vmem_limit_bytes=32 * 1024 * 1024,
        ),
    )(x, w, cos2, sin2s)


# ----------------------------------------------------------------------------
# Flash-style causal attention reading q/k/v straight out of the qkv slab
# ----------------------------------------------------------------------------
def _flash_attn_kernel(q_ref, k_ref, v_ref, o_ref, m_sc, l_sc, acc_sc):
    qi = pl.program_id(2)
    ki = pl.program_id(3)
    tq, d = q_ref.shape[1], q_ref.shape[2]
    tk = k_ref.shape[1]
    q_start = qi * tq
    k_start = ki * tk

    @pl.when(ki == 0)
    def _init():
        m_sc[...] = jnp.full(m_sc.shape, -jnp.inf, dtype=m_sc.dtype)
        l_sc[...] = jnp.zeros_like(l_sc)
        acc_sc[...] = jnp.zeros_like(acc_sc)

    # Causal block skip: KV blocks entirely above the diagonal contribute nothing
    # (their index_map is also clamped, so they cost no DMA either).
    @pl.when(k_start < q_start + tq)
    def _compute():
        scale = 1.0 / math.sqrt(d)
        # Single fused (tq, D) x (tk, D)^T MXU matmul, fp32 accumulation.
        s = lax.dot_general(q_ref[0], k_ref[0], (((1,), (1,)), ((), ())),
                            preferred_element_type=jnp.float32) * scale  # (tq, tk)

        # Tile-local causal mask.
        row = q_start + lax.broadcasted_iota(jnp.int32, (tq, tk), 0)
        col = k_start + lax.broadcasted_iota(jnp.int32, (tq, tk), 1)
        s = jnp.where(col <= row, s, -1e30)

        # Online softmax update.
        m_prev = m_sc[...]
        m_new = jnp.maximum(m_prev, jnp.max(s, axis=-1, keepdims=True))
        alpha = jnp.exp(m_prev - m_new)
        p = jnp.exp(s - m_new)
        l_sc[...] = alpha * l_sc[...] + jnp.sum(p, axis=-1, keepdims=True)
        acc_sc[...] = alpha * acc_sc[...] + jnp.dot(
            p.astype(v_ref.dtype), v_ref[0], preferred_element_type=jnp.float32)
        m_sc[...] = m_new

    # Finalize on the last KV block that contributes to this q block; later
    # (fully masked) KV steps leave the resident output block untouched.
    last_ki = (q_start + tq - 1) // tk

    @pl.when(ki == last_ki)
    def _finalize():
        inv_l = pl.reciprocal(l_sc[...], approx=True)
        o_ref[0] = (acc_sc[...] * inv_l).astype(o_ref.dtype)


def pallas_flash_attention(qkv3, num_heads, head_dim, *, tq=128, tkv=128):
    """qkv3: (B, T, 3*nH*D) bf16 with RoPE already applied to the q/k columns.
    Returns attention output directly in (B, T, nH*D) layout."""
    B, T, threeH = qkv3.shape
    nH, D = num_heads, head_dim
    H = nH * D
    assert threeH == 3 * H
    btq = _pick_tile(T, tq)
    btk = _pick_tile(T, tkv)
    grid = (B, nH, T // btq, T // btk)

    def kv_block(i, j):
        # Clamp fully-masked (above-diagonal) KV steps to the last contributing
        # block index -> same block as previous step -> Pallas issues no DMA.
        last = ((i + 1) * btq - 1) // btk
        return jnp.minimum(j, last)

    return pl.pallas_call(
        _flash_attn_kernel,
        out_shape=jax.ShapeDtypeStruct((B, T, H), qkv3.dtype),
        grid_spec=pltpu.PrefetchScalarGridSpec(
            num_scalar_prefetch=0,
            grid=grid,
            in_specs=[
                # q head h lives at column block h of the qkv slab
                pl.BlockSpec((1, btq, D), lambda b, h, i, j: (b, i, h)),
                # k head h at column block nH + h
                pl.BlockSpec((1, btk, D),
                             lambda b, h, i, j: (b, kv_block(i, j), nH + h)),
                # v head h at column block 2*nH + h
                pl.BlockSpec((1, btk, D),
                             lambda b, h, i, j: (b, kv_block(i, j), 2 * nH + h)),
            ],
            # Lane-dense write straight into the (B, T, H) slab at column h*D.
            out_specs=pl.BlockSpec((1, btq, D), lambda b, h, i, j: (b, i, h)),
            scratch_shapes=[
                pltpu.VMEM((btq, 1), jnp.float32),   # running max m
                pltpu.VMEM((btq, 1), jnp.float32),   # running denom l
                pltpu.VMEM((btq, D), jnp.float32),   # output accumulator
            ],
        ),
        compiler_params=pltpu.CompilerParams(
            dimension_semantics=("parallel", "parallel", "parallel", "arbitrary"),
            vmem_limit_bytes=32 * 1024 * 1024,
        ),
    )(qkv3, qkv3, qkv3)


# ----------------------------------------------------------------------------
# Full forward (glue + Pallas kernels)
# ----------------------------------------------------------------------------
def quant_llama_attention_forward(hidden_states, position_ids, w_qkv, w_o, num_heads):
    """Equivalent of QuantLlamaAttention.forward (past_key_value=None,
    attention_mask=None, use_cache=False). Returns attn_output (B, T, H) bf16."""
    B, T, H = hidden_states.shape
    D = H // num_heads
    half = D // 2

    if position_ids.shape[0] == 1 and B > 1:   # mirror the PyTorch broadcast
        position_ids = jnp.broadcast_to(position_ids, (B, T))

    x_bf = hidden_states.astype(jnp.bfloat16)
    wqkv_bf = w_qkv.astype(jnp.bfloat16)   # (3H, H) natural PyTorch layout
    wo_bf = w_o.astype(jnp.bfloat16)       # (H, H)

    # RoPE tables at full head_dim width (lane-dense), fp32, sign folded in.
    # Same math as the Triton kernel: freq_j = exp(j * (-2 ln 10000 / D)) * pos.
    inv_base = -2.0 * math.log(10000.0) / D
    freqs = jnp.exp(jnp.arange(half, dtype=jnp.float32) * inv_base)      # (half,)
    ang = position_ids.astype(jnp.float32)[:, :, None] * freqs[None, None, :]
    cos_h = jnp.cos(ang)
    sin_h = jnp.sin(ang)
    cos2 = jnp.concatenate([cos_h, cos_h], axis=-1).reshape(B * T, D)    # (B*T, D)
    sin2s = jnp.concatenate([-sin_h, sin_h], axis=-1).reshape(B * T, D)  # (B*T, D)

    # qkv projection with fused rotate-half RoPE on the q/k columns.
    qkv = pallas_qkv_rope_matmul(x_bf.reshape(B * T, H), wqkv_bf, cos2, sin2s,
                                 num_heads, D)                  # (B*T, 3H) bf16
    qkv3 = qkv.reshape(B, T, 3 * H)                             # free reshape

    # Causal flash attention reading q/k/v straight from the qkv slab; the
    # output is already (B, T, H), so no transposes / relayouts in HBM at all.
    attn = pallas_flash_attention(qkv3, num_heads, D)           # (B, T, H) bf16

    # Output projection.
    out = pallas_matmul_nt(attn.reshape(B * T, H), wo_bf)       # (B*T, H) bf16
    return out.reshape(B, T, H)


# ----------------------------------------------------------------------------
# Pure-JAX reference (fp32 math, bf16 rounding mirrored at kernel boundaries)
# ----------------------------------------------------------------------------
def reference_forward(hidden_states, position_ids, w_qkv, w_o, num_heads):
    B, T, H = hidden_states.shape
    D = H // num_heads
    half = D // 2

    x = hidden_states.astype(jnp.bfloat16).astype(jnp.float32)
    wq = w_qkv.astype(jnp.bfloat16).astype(jnp.float32)
    wo = w_o.astype(jnp.bfloat16).astype(jnp.float32)

    qkv = (x.reshape(B * T, H) @ wq.T).reshape(B, T, 3, num_heads, D)

    inv_base = -2.0 * math.log(10000.0) / D
    freqs = jnp.exp(jnp.arange(half, dtype=jnp.float32) * inv_base)
    ang = position_ids.astype(jnp.float32)[:, :, None] * freqs
    cos = jnp.cos(ang)[:, :, None, :]
    sin = jnp.sin(ang)[:, :, None, :]

    def rope(t):
        xh, yh = t[..., :half], t[..., half:]
        return jnp.concatenate([xh * cos - yh * sin, xh * sin + yh * cos], axis=-1)

    # RoPE applied in fp32 on the fp32 matmul result, then the bf16 boundary
    # (matches the fused qkv+RoPE kernel's fp32 epilogue before writeback).
    q = rope(qkv[:, :, 0]).astype(jnp.bfloat16).astype(jnp.float32)
    k = rope(qkv[:, :, 1]).astype(jnp.bfloat16).astype(jnp.float32)
    v = qkv[:, :, 2].astype(jnp.bfloat16).astype(jnp.float32)

    q = jnp.transpose(q, (0, 2, 1, 3))
    k = jnp.transpose(k, (0, 2, 1, 3))
    v = jnp.transpose(v, (0, 2, 1, 3))

    scores = jnp.einsum("bhqd,bhkd->bhqk", q, k) / math.sqrt(D)
    mask = jnp.tril(jnp.ones((T, T), dtype=bool))
    scores = jnp.where(mask, scores, -jnp.inf)
    p = jax.nn.softmax(scores, axis=-1)
    o = jnp.einsum("bhqk,bhkd->bhqd", p, v)
    o = jnp.transpose(o, (0, 2, 1, 3)).reshape(B * T, H)
    o = o.astype(jnp.bfloat16).astype(jnp.float32)       # inter-kernel bf16 boundary
    return (o @ wo.T).reshape(B, T, H)


if __name__ == "__main__":
    # Small but layout-friendly shapes implied by the module (head_dim = 128
    # keeps all blocks lane-dense, as in real Llama).
    B, T, nH, D = 2, 16, 2, 128
    H = nH * D  # hidden_size = 256

    key = jax.random.PRNGKey(0)
    k1, k2, k3 = jax.random.split(key, 3)
    hidden_states = jax.random.normal(k1, (B, T, H), dtype=jnp.float32)
    # qkv_proj / o_proj are quantized Linears in the original; modeled as dense
    # no-bias Linears with PyTorch (out_features, in_features) weight layout.
    w_qkv = jax.random.normal(k2, (3 * H, H), dtype=jnp.float32) / math.sqrt(H)
    w_o = jax.random.normal(k3, (H, H), dtype=jnp.float32) / math.sqrt(H)
    position_ids = jnp.broadcast_to(jnp.arange(T, dtype=jnp.int32)[None, :], (B, T))

    out = quant_llama_attention_forward(hidden_states, position_ids, w_qkv, w_o, nH)
    out = jax.block_until_ready(out)

    ref = reference_forward(hidden_states, position_ids, w_qkv, w_o, nH)
    np.testing.assert_allclose(
        np.asarray(out, dtype=np.float32),
        np.asarray(ref, dtype=np.float32),
        atol=3e-2, rtol=3e-2,
    )
    print("KERNEL_OK")
</pallas_src>

<mosaic_0001>
module attributes {stable_mosaic.version = 11 : i64} {
  func.func @kernel(%arg0: i32, %arg1: i32, %arg2: i32, %arg3: memref<32x256xbf16, #tpu.memory_space<vmem>>, %arg4: memref<256x256xbf16, #tpu.memory_space<vmem>>, %arg5: memref<32x128xf32, #tpu.memory_space<vmem>>, %arg6: memref<32x128xf32, #tpu.memory_space<vmem>>, %arg7: memref<32x256xbf16, #tpu.memory_space<vmem>>, %arg8: memref<32x256xf32, #tpu.memory_space<vmem>>) attributes {dimension_semantics = [#tpu.dimension_semantics<parallel>, #tpu.dimension_semantics<parallel>, #tpu.dimension_semantics<arbitrary>], iteration_bounds = array<i64: 1, 3, 1>, scalar_prefetch = 0 : i64, scratch_operands = 1 : i64, tpu.core_type = #tpu.core_type<tc>, window_params = [{transform_indices = @transform_0, window_bounds = array<i64: 32, 256>}, {transform_indices = @transform_1, window_bounds = array<i64: 256, 256>}, {transform_indices = @transform_2, window_bounds = array<i64: 32, 128>}, {transform_indices = @transform_3, window_bounds = array<i64: 32, 128>}, {transform_indices = @transform_4, window_bounds = array<i64: 32, 256>}]} {
    %c0_i32 = arith.constant 0 : i32
    %0 = arith.cmpi eq, %arg2, %c0_i32 : i32
    %1 = arith.extui %0 : i1 to i32
    %c0_i32_0 = arith.constant 0 : i32
    %2 = arith.cmpi ne, %1, %c0_i32_0 : i32
    scf.if %2 {
      %cst_11 = arith.constant 0.000000e+00 : f32
      %18 = vector.broadcast %cst_11 : f32 to vector<32x256xf32>
      %c0_12 = arith.constant 0 : index
      %c0_13 = arith.constant 0 : index
      %19 = vector.load %arg8[%c0_12, %c0_13] : memref<32x256xf32, #tpu.memory_space<vmem>>, vector<32x256xf32>
      tpu.vector_store %arg8[%c0_12, %c0_13], %18 {strides = array<i32>} : memref<32x256xf32, #tpu.memory_space<vmem>>, vector<32x256xf32>,
    } else {
    }
    %c0 = arith.constant 0 : index
    %c0_1 = arith.constant 0 : index
    %3 = vector.load %arg8[%c0, %c0_1] : memref<32x256xf32, #tpu.memory_space<vmem>>, vector<32x256xf32>
    %c0_2 = arith.constant 0 : index
    %c0_3 = arith.constant 0 : index
    %4 = vector.load %arg3[%c0_2, %c0_3] : memref<32x256xbf16, #tpu.memory_space<vmem>>, vector<32x256xbf16>
    %c0_4 = arith.constant 0 : index
    %c0_5 = arith.constant 0 : index
    %5 = vector.load %arg4[%c0_4, %c0_5] : memref<256x256xbf16, #tpu.memory_space<vmem>>, vector<256x256xbf16>
    %cst = arith.constant dense<0.000000e+00> : vector<32x256xf32>
    %6 = tpu.matmul %4, %5, %cst {dimension_numbers = #tpu.dot_dimension_numbers<[1], [1], [0], [0], [0, 0, 1, 0], [], []>} : vector<32x256xbf16>, vector<256x256xbf16>, vector<32x256xf32> -> vector<32x256xf32>
    %7 = arith.addf %3, %6 : vector<32x256xf32>
    %c0_6 = arith.constant 0 : index
    %c0_7 = arith.constant 0 : index
    %8 = vector.load %arg8[%c0_6, %c0_7] : memref<32x256xf32, #tpu.memory_space<vmem>>, vector<32x256xf32>
    tpu.vector_store %arg8[%c0_6, %c0_7], %7 {strides = array<i32>} : memref<32x256xf32, #tpu.memory_space<vmem>>, vector<32x256xf32>,
    %c0_i32_8 = arith.constant 0 : i32
    %9 = arith.cmpi eq, %arg2, %c0_i32_8 : i32
    %c2_i32 = arith.constant 2 : i32
    %10 = arith.cmpi slt, %arg1, %c2_i32 : i32
    %11 = arith.andi %9, %10 : i1
    %12 = arith.extui %11 : i1 to i32
    %c0_i32_9 = arith.constant 0 : i32
    %13 = arith.cmpi ne, %12, %c0_i32_9 : i32
    scf.if %13 {
      %c0_11 = arith.constant 0 : index
      %c0_12 = arith.constant 0 : index
      %18 = vector.load %arg5[%c0_11, %c0_12] : memref<32x128xf32, #tpu.memory_space<vmem>>, vector<32x128xf32>
      %c0_13 = arith.constant 0 : index
      %c0_14 = arith.constant 0 : index
      %19 = vector.load %arg6[%c0_13, %c0_14] : memref<32x128xf32, #tpu.memory_space<vmem>>, vector<32x128xf32>
      %c0_15 = arith.constant 0 : index
      %c0_16 = arith.constant 0 : index
      %20 = vector.load %arg8[%c0_15, %c0_16] : memref<32x256xf32, #tpu.memory_space<vmem>>, vector<32x256xf32>
      %21 = vector.extract_strided_slice %20 {offsets = [0, 0], sizes = [32, 128], strides = [1, 1]} : vector<32x256xf32> to vector<32x128xf32>
      %22 = arith.mulf %21, %18 : vector<32x128xf32>
      %c64_i32 = arith.constant 64 : i32
      %23 = tpu.dynamic_rotate %21 by %c64_i32 dim 1 : vector<32x128xf32>, i32 -> vector<32x128xf32>
      %24 = arith.mulf %23, %19 : vector<32x128xf32>
      %25 = arith.addf %22, %24 : vector<32x128xf32>
      %26 = arith.truncf %25 : vector<32x128xf32> to vector<32x128xbf16>
      %c0_17 = arith.constant 0 : index
      %c0_18 = arith.constant 0 : index
      %27 = vector.load %arg7[%c0_17, %c0_18] : memref<32x256xbf16, #tpu.memory_space<vmem>>, vector<32x128xbf16>
      tpu.vector_store %arg7[%c0_17, %c0_18], %26 {strides = array<i32>} : memref<32x256xbf16, #tpu.memory_space<vmem>>, vector<32x128xbf16>,
      %28 = vector.extract_strided_slice %20 {offsets = [0, 128], sizes = [32, 128], strides = [1, 1]} : vector<32x256xf32> to vector<32x128xf32>
      %29 = arith.mulf %28, %18 : vector<32x128xf32>
      %c64_i32_19 = arith.constant 64 : i32
      %30 = tpu.dynamic_rotate %28 by %c64_i32_19 dim 1 : vector<32x128xf32>, i32 -> vector<32x128xf32>
      %31 = arith.mulf %30, %19 : vector<32x128xf32>
      %32 = arith.addf %29, %31 : vector<32x128xf32>
      %33 = arith.truncf %32 : vector<32x128xf32> to vector<32x128xbf16>
      %c0_20 = arith.constant 0 : index
      %c128 = arith.constant 128 : index
      %34 = vector.load %arg7[%c0_20, %c128] : memref<32x256xbf16, #tpu.memory_space<vmem>>, vector<32x128xbf16>
      tpu.vector_store %arg7[%c0_20, %c128], %33 {strides = array<i32>} : memref<32x256xbf16, #tpu.memory_space<vmem>>, vector<32x128xbf16>,
    } else {
    }
    %true = arith.constant true
    %14 = arith.xori %10, %true : i1
    %15 = arith.andi %9, %14 : i1
    %16 = arith.extui %15 : i1 to i32
    %c0_i32_10 = arith.constant 0 : i32
    %17 = arith.cmpi ne, %16, %c0_i32_10 : i32
    scf.if %17 {
      %c0_11 = arith.constant 0 : index
      %c0_12 = arith.constant 0 : index
      %18 = vector.load %arg8[%c0_11, %c0_12] : memref<32x256xf32, #tpu.memory_space<vmem>>, vector<32x256xf32>
      %19 = arith.truncf %18 : vector<32x256xf32> to vector<32x256xbf16>
      %c0_13 = arith.constant 0 : index
      %c0_14 = arith.constant 0 : index
      %20 = vector.load %arg7[%c0_13, %c0_14] : memref<32x256xbf16, #tpu.memory_space<vmem>>, vector<32x256xbf16>
      tpu.vector_store %arg7[%c0_13, %c0_14], %19 {strides = array<i32>} : memref<32x256xbf16, #tpu.memory_space<vmem>>, vector<32x256xbf16>,
    } else {
    }
    return
  }
  func.func @transform_0(%arg0: i32, %arg1: i32, %arg2: i32) -> (i32, i32) {
    %c0_i32 = arith.constant 0 : i32
    return %arg0, %arg2 : i32, i32
  }
  func.func @transform_1(%arg0: i32, %arg1: i32, %arg2: i32) -> (i32, i32) {
    %c0_i32 = arith.constant 0 : i32
    return %arg1, %arg2 : i32, i32
  }
  func.func @transform_2(%arg0: i32, %arg1: i32, %arg2: i32) -> (i32, i32) {
    %c0_i32 = arith.constant 0 : i32
    %c0_i32_0 = arith.constant 0 : i32
    return %arg0, %c0_i32 : i32, i32
  }
  func.func @transform_3(%arg0: i32, %arg1: i32, %arg2: i32) -> (i32, i32) {
    %c0_i32 = arith.constant 0 : i32
    %c0_i32_0 = arith.constant 0 : i32
    return %arg0, %c0_i32 : i32, i32
  }
  func.func @transform_4(%arg0: i32, %arg1: i32, %arg2: i32) -> (i32, i32) {
    %c0_i32 = arith.constant 0 : i32
    return %arg0, %arg1 : i32, i32
  }
}

</mosaic_0001>

<llo_original>
// kernel: tpu_custom_call.1
$region0: #{tpu_custom_call.1}
  #allocation0 [shape = 'u32[]', space=smem, size = 0x4, offset = 0x4, fixed_abs, tag = 'smem constant byte address 0x4 - core index']
  #allocation1 [shape = 'u32[144,128]{1,0:T(1,128)}', space=vmem, size = 0x12000, scoped, tag = 'internal scratch']
  #allocation2 [shape = 'f32[32,256]{1,0:T(8,128)}', space=vmem, size = 0x8000, scoped, tag = 'scratch operand']
  %s0 = inlined_call_operand.hbm [shape: bf16[32,256], index: 0, kind: input, shape index: {}]
  %s1 = inlined_call_operand.hbm [shape: bf16[768,256], index: 1, kind: input, shape index: {}]
  %s2 = inlined_call_operand.hbm [shape: f32[32,128], index: 2, kind: input, shape index: {}]
  %s3 = inlined_call_operand.hbm [shape: f32[32,128], index: 3, kind: input, shape index: {}]
  %s4 = inlined_call_operand.hbm [shape: bf16[32,768], index: 4, kind: output, shape index: {}]
  %s5 = sld [smem:[#allocation0]]
  $region77: #{tpu_custom_call.1} parent=0
    _
  %s7 = ssub.s32 1, %s5
  %s8 = scalar_select 0, %s7, %s5
  $region1: #{tpu_custom_call.1} parent=0
    #allocation3 [shape = 'u8[16384]{0}', space=vmem, size = 0x4000, scoped, tag = 'input window, operand 0, single buffered']
    #allocation4 [shape = 's32[2]{0}', space=sflag, size = 0x8, scoped, tag = 'scoped memory for tpu_custom_call.1']
    #allocation5 [shape = 's32[2]{0}', space=sflag, size = 0x8, scoped, tag = 'scoped memory for tpu_custom_call.1']
    #allocation6 [shape = 'u8[262144]{0}', space=vmem, size = 0x40000, scoped, tag = 'input window, operand 1']
    #allocation7 [shape = 's32[2]{0}', space=sflag, size = 0x8, scoped, tag = 'scoped memory for tpu_custom_call.1']
    #allocation8 [shape = 'u8[16384]{0}', space=vmem, size = 0x4000, scoped, tag = 'input window, operand 2, single buffered']
    #allocation9 [shape = 'u8[16384]{0}', space=vmem, size = 0x4000, scoped, tag = 'input window, operand 3, single buffered']
    #allocation10 [shape = 's32[1]{0}', space=sflag, size = 0x4, scoped, tag = 'scoped memory for tpu_custom_call.1']
    #allocation11 [shape = 'u8[32768]{0}', space=vmem, size = 0x8000, scoped, tag = 'output window, operand 0']
    %9 = vsyncpa [#allocation4], 0
    %10 = vsyncpa [#allocation7], 0
    %s11 = scalar_lea.sflag [#allocation7], 1
    %12 = vsyncpa %s11, 0
    %13 = vsyncpa [#allocation10], 0
    %14 = vsyncpa [#allocation5], 0
    %s15 = scalar_lea.sflag [#allocation5], 1
    %16 = vsyncpa %s15, 0
    loop: start=0, step=1, limit=5
    $region2: #{tpu_custom_call.1} parent=1 // loop_pre_header
      _
    $region3: #{tpu_custom_call.1} parent=1 // loop_header
      %s18 = sphi 0, %s22
      %p19 = scmp.ge.s32.totalorder %s18, 5
      %s25 = sphi 0, %s44
      %s26 = sphi 0, %s40
      %s27 = sphi 0, %s36
      %s28 = sphi 0, %s25
      %s29 = sphi 0, %s26
      %s30 = sphi 0, %s27
      %s31 = sphi 0, %s28
      %s32 = sphi 0, %s29
      %s33 = sphi 0, %s30
      %s49 = sphi 0, %s51
      %s52 = sphi 0, %s49
      %s53 = sphi 0, %s52
      %s69 = sphi 0, %s53
      %s77 = sphi 0, %s79
      %s80 = sphi 0, %s77
      %s81 = sphi 0, %s80
      %s97 = sphi 0, %s81
      %s103 = sphi 0, %s105
      %s106 = sphi 0, %s103
      %s107 = sphi 0, %s106
      %s123 = sphi 0, %s107
      %s129 = sphi 0, %s131
      %s132 = sphi 0, %s129
      %s133 = sphi 0, %s132
      %s149 = sphi 0, %s133
      %s157 = sphi 0, %s159
      %s160 = sphi 0, %s157
      %s161 = sphi 0, %s160
      %s177 = sphi 0, %s161
    $region4: #{tpu_custom_call.1} parent=1 // loop_header_branch
      %21 = sbr.rel (%p19) target = $region8
    $region5: #{tpu_custom_call.1} parent=1 // loop_body
      %s23 = ssub.s32 %s18, 1
      %s24 = ssub.s32 %s18, 2
      %s34 = sadd.s32 1, %s27
      %p35 = scmp.ge.s32.totalorder %s34, 1
      %s36 = scalar_select %p35, 0, %s34
      %s37 = sadd.s32 1, %s26
      %s38 = scalar_select %p35, %s37, %s26
      %p39 = scmp.ge.s32.totalorder %s38, 3
      %s40 = scalar_select %p39, 0, %s38
      %s41 = sadd.s32 1, %s25
      %s42 = scalar_select %p39, %s41, %s25
      %p43 = scmp.ge.s32.totalorder %s42, 1
      %s44 = scalar_select %p43, 0, %s42
      %s45 = ssub.s32 %s25, %s44
      %s46 = ssub.s32 %s27, %s36
      %s47 = sor.u32 %s45, %s46
      %p48 = scmp.eq.s32.totalorder %s47, 0
      %s50 = sadd.s32 %s49, 1
      %s51 = scalar_select %p48, %s49, %s50
      %p54 = pneg %p48
      %p55 = scmp.eq.s32.totalorder %s18, 2
      %p56 = por %p54, %p55
      %p57 = scmp.ne.s32.totalorder %s49, %s52
      %p58 = scmp.eq.s32.totalorder %s18, 0
      %p59 = por %p57, %p58
      %p60 = scmp.ne.s32.totalorder %s49, %s52
      %p61 = scmp.eq.s32.totalorder %s23, 2
      %p62 = por %p60, %p61
      %p63 = scmp.ne.s32.totalorder %s52, %s53
      %p64 = scmp.eq.s32.totalorder %s23, 0
      %p65 = por %p63, %p64
      %p66 = scmp.ne.s32.totalorder %s52, %s53
      %p67 = scmp.eq.s32.totalorder %s24, 2
      %p68 = por %p66, %p67
      %p70 = scmp.ne.s32.totalorder %s53, %s69
      %p71 = scmp.eq.s32.totalorder %s24, 0
      %p72 = por %p70, %p71
      %s73 = ssub.s32 %s26, %s40
      %s74 = ssub.s32 %s27, %s36
      %s75 = sor.u32 %s73, %s74
      %p76 = scmp.eq.s32.totalorder %s75, 0
      %s78 = sadd.s32 %s77, 1
      %s79 = scalar_select %p76, %s77, %s78
      %p82 = pneg %p76
      %p83 = scmp.eq.s32.totalorder %s18, 2
      %p84 = por %p82, %p83
      %p85 = scmp.ne.s32.totalorder %s77, %s80
      %p86 = scmp.eq.s32.totalorder %s18, 0
      %p87 = por %p85, %p86
      %p88 = scmp.ne.s32.totalorder %s77, %s80
      %p89 = scmp.eq.s32.totalorder %s23, 2
      %p90 = por %p88, %p89
      %p91 = scmp.ne.s32.totalorder %s80, %s81
      %p92 = scmp.eq.s32.totalorder %s23, 0
      %p93 = por %p91, %p92
      %p94 = scmp.ne.s32.totalorder %s80, %s81
      %p95 = scmp.eq.s32.totalorder %s24, 2
      %p96 = por %p94, %p95
      %p98 = scmp.ne.s32.totalorder %s81, %s97
      %p99 = scmp.eq.s32.totalorder %s24, 0
      %p100 = por %p98, %p99
      %s101 = ssub.s32 %s25, %s44
      %p102 = scmp.eq.s32.totalorder %s101, 0
      %s104 = sadd.s32 %s103, 1
      %s105 = scalar_select %p102, %s103, %s104
      %p108 = pneg %p102
      %p109 = scmp.eq.s32.totalorder %s18, 2
      %p110 = por %p108, %p109
      %p111 = scmp.ne.s32.totalorder %s103, %s106
      %p112 = scmp.eq.s32.totalorder %s18, 0
      %p113 = por %p111, %p112
      %p114 = scmp.ne.s32.totalorder %s103, %s106
      %p115 = scmp.eq.s32.totalorder %s23, 2
      %p116 = por %p114, %p115
      %p117 = scmp.ne.s32.totalorder %s106, %s107
      %p118 = scmp.eq.s32.totalorder %s23, 0
      %p119 = por %p117, %p118
      %p120 = scmp.ne.s32.totalorder %s106, %s107
      %p121 = scmp.eq.s32.totalorder %s24, 2
      %p122 = por %p120, %p121
      %p124 = scmp.ne.s32.totalorder %s107, %s123
      %p125 = scmp.eq.s32.totalorder %s24, 0
      %p126 = por %p124, %p125
      %s127 = ssub.s32 %s25, %s44
      %p128 = scmp.eq.s32.totalorder %s127, 0
      %s130 = sadd.s32 %s129, 1
      %s131 = scalar_select %p128, %s129, %s130
      %p134 = pneg %p128
      %p135 = scmp.eq.s32.totalorder %s18, 2
      %p136 = por %p134, %p135
      %p137 = scmp.ne.s32.totalorder %s129, %s132
      %p138 = scmp.eq.s32.totalorder %s18, 0
      %p139 = por %p137, %p138
      %p140 = scmp.ne.s32.totalorder %s129, %s132
      %p141 = scmp.eq.s32.totalorder %s23, 2
      %p142 = por %p140, %p141
      %p143 = scmp.ne.s32.totalorder %s132, %s133
      %p144 = scmp.eq.s32.totalorder %s23, 0
      %p145 = por %p143, %p144
      %p146 = scmp.ne.s32.totalorder %s132, %s133
      %p147 = scmp.eq.s32.totalorder %s24, 2
      %p148 = por %p146, %p147
      %p150 = scmp.ne.s32.totalorder %s133, %s149
      %p151 = scmp.eq.s32.totalorder %s24, 0
      %p152 = por %p150, %p151
      %s153 = ssub.s32 %s25, %s44
      %s154 = ssub.s32 %s26, %s40
      %s155 = sor.u32 %s153, %s154
      %p156 = scmp.eq.s32.totalorder %s155, 0
      %s158 = sadd.s32 %s157, 1
      %s159 = scalar_select %p156, %s157, %s158
      %p162 = pneg %p156
      %p163 = scmp.eq.s32.totalorder %s18, 2
      %p164 = por %p162, %p163
      %p165 = scmp.ne.s32.totalorder %s157, %s160
      %p166 = scmp.eq.s32.totalorder %s18, 0
      %p167 = por %p165, %p166
      %p168 = scmp.ne.s32.totalorder %s157, %s160
      %p169 = scmp.eq.s32.totalorder %s23, 2
      %p170 = por %p168, %p169
      %p171 = scmp.ne.s32.totalorder %s160, %s161
      %p172 = scmp.eq.s32.totalorder %s23, 0
      %p173 = por %p171, %p172
      %p174 = scmp.ne.s32.totalorder %s160, %s161
      %p175 = scmp.eq.s32.totalorder %s24, 2
      %p176 = por %p174, %p175
      %p178 = scmp.ne.s32.totalorder %s161, %s177
      %p179 = scmp.eq.s32.totalorder %s24, 0
      %p180 = por %p178, %p179
      %p181 = scmp.le.s32.totalorder 1, %s18
      %p182 = scmp.lt.s32.totalorder %s18, 4
      %p183 = pnand %p181, %p182
      %p184 = pneg %p183
      // Predicated region
      $region9: #{tpu_custom_call.1} parent=5 // pred_check
        _
      $region10: #{tpu_custom_call.1} parent=5 // pred_check_branch
        %186 = sbr.rel (%p183) target = $region12
      $region11: #{tpu_custom_call.1} parent=5 // pred_region
        %s187 = ssub.s32 %s18, 1
        // Predicated region
        $region13: #{tpu_custom_call.1} parent=11 // pred_check
          %p188 = pneg %p65
        $region14: #{tpu_custom_call.1} parent=11 // pred_check_branch
          %190 = sbr.rel (%p188) target = $region16
        $region15: #{tpu_custom_call.1} parent=11 // pred_region
          %s191 = smul.u32 4, %s28
          %s192 = smul.u32 2, %s30
          %s194 = ssub.s32 512, 512
          %195 = vsyncadd [#allocation4], %s194
          %s196 = smul.addr %s191, 2
          %s197 = sadd.s32 %s192, %s196
          %s198 = smul.addr %s197, 64
          %s199 = scalar_lea.hbm %s0, %s198
          %s200 = sshll.u32 [#allocation3], 4
          %s201 = int_to_ptr.vmem [resolvable:$true] %s200
          %206 = dma.hbm_to_vmem [thread:$0]  %s199, 512, %s201, [#allocation4], 128, 128, 8
        $region16: #{tpu_custom_call.1} parent=11 // pred_fallthru
          _
        // Predicated region
        $region17: #{tpu_custom_call.1} parent=11 // pred_check
          %p207 = pneg %p119
        $region18: #{tpu_custom_call.1} parent=11 // pred_check_branch
          %209 = sbr.rel (%p207) target = $region20
        $region19: #{tpu_custom_call.1} parent=11 // pred_region
          %s210 = smul.u32 4, %s28
          %s212 = ssub.s32 512, 512
          %213 = vsyncadd [#allocation7], %s212
          %s214 = smul.addr %s210, 128
          %s215 = scalar_lea.hbm %s2, %s214
          %s216 = sshll.u32 [#allocation8], 4
          %s217 = int_to_ptr.vmem [resolvable:$true] %s216
          %222 = dma.hbm_to_vmem [thread:$0]  %s215, 512, %s217, [#allocation7], 128, 128, 8
        $region20: #{tpu_custom_call.1} parent=11 // pred_fallthru
          _
        // Predicated region
        $region21: #{tpu_custom_call.1} parent=11 // pred_check
          %p223 = pneg %p145
        $region22: #{tpu_custom_call.1} parent=11 // pred_check_branch
          %225 = sbr.rel (%p223) target = $region24
        $region23: #{tpu_custom_call.1} parent=11 // pred_region
          %s226 = smul.u32 4, %s28
          %s228 = ssub.s32 512, 512
          %229 = vsyncadd [#allocation10], %s228
          %s230 = smul.addr %s226, 128
          %s231 = scalar_lea.hbm %s3, %s230
          %s232 = sshll.u32 [#allocation9], 4
          %s233 = int_to_ptr.vmem [resolvable:$true] %s232
          %238 = dma.hbm_to_vmem [thread:$0]  %s231, 512, %s233, [#allocation10], 128, 128, 8
        $region24: #{tpu_custom_call.1} parent=11 // pred_fallthru
          _
      $region12: #{tpu_custom_call.1} parent=5 // pred_fallthru
        _
      %p239 = scmp.lt.s32.totalorder %s18, 3
      // Predicated region
      $region25: #{tpu_custom_call.1} parent=5 // pred_check
        %p240 = pneg %p239
      $region26: #{tpu_custom_call.1} parent=5 // pred_check_branch
        %242 = sbr.rel (%p240) target = $region28
      $region27: #{tpu_custom_call.1} parent=5 // pred_region
        // Predicated region
        $region29: #{tpu_custom_call.1} parent=27 // pred_check
          %p243 = pneg %p87
        $region30: #{tpu_custom_call.1} parent=27 // pred_check_branch
          %245 = sbr.rel (%p243) target = $region32
        $region31: #{tpu_custom_call.1} parent=27 // pred_region
          %s246 = sand.u32 %s18, 1
          %s247 = scalar_lea.sflag [#allocation7], %s246
          %s248 = sand.u32 %s77, 1
          %s249 = smul.addr %s248, 256
          %s250 = scalar_lea.vmem [#allocation6], %s249
          %s251 = smul.u32 32, %s26
          %s252 = smul.u32 2, %s27
          %s254 = ssub.s32 4096, 4096
          %255 = vsyncadd %s247, %s254
          %s256 = smul.addr %s251, 2
          %s257 = sadd.s32 %s252, %s256
          %s258 = smul.addr %s257, 64
          %s259 = scalar_lea.hbm %s1, %s258
          %s260 = sshll.u32 %s250, 4
          %s261 = int_to_ptr.vmem [resolvable:$true] %s260
          %266 = dma.hbm_to_vmem [thread:$0]  %s259, 4096, %s261, %s247, 128, 128, 8
        $region32: #{tpu_custom_call.1} parent=27 // pred_fallthru
          _
      $region28: #{tpu_custom_call.1} parent=5 // pred_fallthru
        _
      %p267 = scmp.le.s32.totalorder 1, %s18
      %p268 = scmp.lt.s32.totalorder %s18, 4
      %p269 = pnand %p267, %p268
      %p270 = pneg %p269
      // Predicated region
      $region33: #{tpu_custom_call.1} parent=5 // pred_check
        _
      $region34: #{tpu_custom_call.1} parent=5 // pred_check_branch
        %272 = sbr.rel (%p269) target = $region36
      $region35: #{tpu_custom_call.1} parent=5 // pred_region
        %s273 = ssub.s32 %s18, 1
        // Predicated region
        $region37: #{tpu_custom_call.1} parent=35 // pred_check
          %p274 = pneg %p65
        $region38: #{tpu_custom_call.1} parent=35 // pred_check_branch
          %276 = sbr.rel (%p274) target = $region40
        $region39: #{tpu_custom_call.1} parent=35 // pred_region
          %277 = dma.done [#allocation4], 512
        $region40: #{tpu_custom_call.1} parent=35 // pred_fallthru
          _
        %s278 = sand.u32 %s23, 1
        %s279 = scalar_lea.sflag [#allocation7], %s278
        %s280 = sand.u32 %s80, 1
        %s281 = smul.addr %s280, 256
        %s282 = scalar_lea.vmem [#allocation6], %s281
        // Predicated region
        $region41: #{tpu_custom_call.1} parent=35 // pred_check
          %p283 = pneg %p93
        $region42: #{tpu_custom_call.1} parent=35 // pred_check_branch
          %285 = sbr.rel (%p283) target = $region44
        $region43: #{tpu_custom_call.1} parent=35 // pred_region
          %286 = dma.done %s279, 4096
        $region44: #{tpu_custom_call.1} parent=35 // pred_fallthru
          _
        // Predicated region
        $region45: #{tpu_custom_call.1} parent=35 // pred_check
          %p287 = pneg %p119
        $region46: #{tpu_custom_call.1} parent=35 // pred_check_branch
          %289 = sbr.rel (%p287) target = $region48
        $region47: #{tpu_custom_call.1} parent=35 // pred_region
          %290 = dma.done [#allocation7], 512
        $region48: #{tpu_custom_call.1} parent=35 // pred_fallthru
          _
        // Predicated region
        $region49: #{tpu_custom_call.1} parent=35 // pred_check
          %p291 = pneg %p145
        $region50: #{tpu_custom_call.1} parent=35 // pred_check_branch
          %293 = sbr.rel (%p291) target = $region52
        $region51: #{tpu_custom_call.1} parent=35 // pred_region
          %294 = dma.done [#allocation10], 512
        $region52: #{tpu_custom_call.1} parent=35 // pred_fallthru
          _
        %p295 = pneg %p65
        %p296 = pneg %p62
        %s297 = sand.u32 %s23, 1
        %s298 = scalar_lea.sflag [#allocation7], %s297
        %s299 = sand.u32 %s80, 1
        %s300 = smul.addr %s299, 256
        %s301 = scalar_lea.vmem [#allocation6], %s300
        %p302 = pneg %p93
        %p303 = pneg %p90
        %p304 = pneg %p119
        %p305 = pneg %p116
        %p306 = pneg %p145
        %p307 = pneg %p142
        %p308 = pneg %p173
        %p309 = pneg %p170
        %s310 = sand.u32 %s160, 1
        %s311 = scalar_lea.sflag [#allocation5], %s310
        %s312 = sand.u32 %s160, 1
        %s313 = smul.addr %s312, 32
        %s314 = scalar_lea.vmem [#allocation11], %s313
        %s315 = smul.u32 4, %s28
        %s316 = smul.u32 2, %s30
        %s317 = smul.u32 32, %s29
        %s318 = smul.u32 2, %s30
        %s319 = smul.u32 4, %s28
        %s320 = smul.u32 4, %s28
        %s321 = smul.u32 4, %s28
        %s322 = smul.u32 2, %s29
        %p323 = scmp.eq.s32.totalorder %s30, 0
        // Predicated region
        $region53: #{tpu_custom_call.1} parent=35 // pred_check
          %p324 = pneg %p323
        $region54: #{tpu_custom_call.1} parent=35 // pred_check_branch
          %326 = sbr.rel (%p324) target = $region56
        $region55: #{tpu_custom_call.1} parent=35 // pred_region
          %327 = vst [vmem:[#allocation2] sm:$0xff] 0.0
          %328 = vst [vmem:[#allocation2 + $0x8] sm:$0xff] 0.0
          %329 = vst [vmem:[#allocation2 + $0x10] sm:$0xff] 0.0
          %330 = vst [vmem:[#allocation2 + $0x18] sm:$0xff] 0.0
          %331 = vst [vmem:[#allocation2 + $0x20] sm:$0xff] 0.0
          %332 = vst [vmem:[#allocation2 + $0x28] sm:$0xff] 0.0
          %333 = vst [vmem:[#allocation2 + $0x30] sm:$0xff] 0.0
          %334 = vst [vmem:[#allocation2 + $0x38] sm:$0xff] 0.0
        $region56: #{tpu_custom_call.1} parent=35 // pred_fallthru
          _
        %v335 = vld [vmem:[#allocation2] sm:$0xff]
        %v336 = vld [vmem:[#allocation2 + $0x8] sm:$0xff]
        %v337 = vld [vmem:[#allocation2 + $0x10] sm:$0xff]
        %v338 = vld [vmem:[#allocation2 + $0x18] sm:$0xff]
        %v339 = vld [vmem:[#allocation2 + $0x20] sm:$0xff]
        %v340 = vld [vmem:[#allocation2 + $0x28] sm:$0xff]
        %v341 = vld [vmem:[#allocation2 + $0x30] sm:$0xff]
        %v342 = vld [vmem:[#allocation2 + $0x38] sm:$0xff]
        %v343 = vld [vmem:[#allocation3] sm:$0xff]
        %v344 = vld [vmem:[#allocation3 + $0x8] sm:$0xff]
        %v345 = vld [vmem:[#allocation3 + $0x10] sm:$0xff]
        %v346 = vld [vmem:[#allocation3 + $0x18] sm:$0xff]
        %v347 = vld [vmem:[%s282] sm:$0xff]
        %v348 = vld [vmem:[%s282 + $0x8] sm:$0xff]
        %v349 = vld [vmem:[%s282 + $0x10] sm:$0xff]
        %v350 = vld [vmem:[%s282 + $0x18] sm:$0xff]
        %v351 = vld [vmem:[%s282 + $0x20] sm:$0xff]
        %v352 = vld [vmem:[%s282 + $0x28] sm:$0xff]
        %v353 = vld [vmem:[%s282 + $0x30] sm:$0xff]
        %v354 = vld [vmem:[%s282 + $0x38] sm:$0xff]
        %v355 = vld [vmem:[%s282 + $0x40] sm:$0xff]
        %v356 = vld [vmem:[%s282 + $0x48] sm:$0xff]
        %v357 = vld [vmem:[%s282 + $0x50] sm:$0xff]
        %v358 = vld [vmem:[%s282 + $0x58] sm:$0xff]
        %v359 = vld [vmem:[%s282 + $0x60] sm:$0xff]
        %v360 = vld [vmem:[%s282 + $0x68] sm:$0xff]
        %v361 = vld [vmem:[%s282 + $0x70] sm:$0xff]
        %v362 = vld [vmem:[%s282 + $0x78] sm:$0xff]
        %v363 = vld [vmem:[%s282 + $0x80] sm:$0xff]
        %v364 = vld [vmem:[%s282 + $0x88] sm:$0xff]
        %v365 = vld [vmem:[%s282 + $0x90] sm:$0xff]
        %v366 = vld [vmem:[%s282 + $0x98] sm:$0xff]
        %v367 = vld [vmem:[%s282 + $0xa0] sm:$0xff]
        %v368 = vld [vmem:[%s282 + $0xa8] sm:$0xff]
        %v369 = vld [vmem:[%s282 + $0xb0] sm:$0xff]
        %v370 = vld [vmem:[%s282 + $0xb8] sm:$0xff]
        %v371 = vld [vmem:[%s282 + $0xc0] sm:$0xff]
        %v372 = vld [vmem:[%s282 + $0xc8] sm:$0xff]
        %v373 = vld [vmem:[%s282 + $0xd0] sm:$0xff]
        %v374 = vld [vmem:[%s282 + $0xd8] sm:$0xff]
        %v375 = vld [vmem:[%s282 + $0xe0] sm:$0xff]
        %v376 = vld [vmem:[%s282 + $0xe8] sm:$0xff]
        %v377 = vld [vmem:[%s282 + $0xf0] sm:$0xff]
        %v378 = vld [vmem:[%s282 + $0xf8] sm:$0xff]
        %v383 = vunpack.c.l.b16 %v343
        %v384 = vunpack.c.h.b16 %v343
        %v385 = vunpack.c.l.b16 %v344
        %v386 = vunpack.c.h.b16 %v344
        %v387 = vunpack.c.l.b16 %v345
        %v388 = vunpack.c.h.b16 %v345
        %v389 = vunpack.c.l.b16 %v346
        %v390 = vunpack.c.h.b16 %v346
        %v391 = vpack.c.b16 %v385, %v383
        %v392 = vpack.c.b16 %v386, %v384
        %v393 = vpack.c.b16 %v389, %v387
        %v394 = vpack.c.b16 %v390, %v388
        %v431 = vunpack.c.l.b16 %v347
        %v432 = vunpack.c.h.b16 %v347
        %v433 = vunpack.c.l.b16 %v348
        %v434 = vunpack.c.h.b16 %v348
        %v435 = vunpack.c.l.b16 %v349
        %v436 = vunpack.c.h.b16 %v349
        %v437 = vunpack.c.l.b16 %v350
        %v438 = vunpack.c.h.b16 %v350
        %v439 = vunpack.c.l.b16 %v351
        %v440 = vunpack.c.h.b16 %v351
        %v441 = vunpack.c.l.b16 %v352
        %v442 = vunpack.c.h.b16 %v352
        %v443 = vunpack.c.l.b16 %v353
        %v444 = vunpack.c.h.b16 %v353
        %v445 = vunpack.c.l.b16 %v354
        %v446 = vunpack.c.h.b16 %v354
        %v447 = vunpack.c.l.b16 %v355
        %v448 = vunpack.c.h.b16 %v355
        %v449 = vunpack.c.l.b16 %v356
        %v450 = vunpack.c.h.b16 %v356
        %v451 = vunpack.c.l.b16 %v357
        %v452 = vunpack.c.h.b16 %v357
        %v453 = vunpack.c.l.b16 %v358
        %v454 = vunpack.c.h.b16 %v358
        %v455 = vunpack.c.l.b16 %v359
        %v456 = vunpack.c.h.b16 %v359
        %v457 = vunpack.c.l.b16 %v360
        %v458 = vunpack.c.h.b16 %v360
        %v459 = vunpack.c.l.b16 %v361
        %v460 = vunpack.c.h.b16 %v361
        %v461 = vunpack.c.l.b16 %v362
        %v462 = vunpack.c.h.b16 %v362
        %v463 = vunpack.c.l.b16 %v363
        %v464 = vunpack.c.h.b16 %v363
        %v465 = vunpack.c.l.b16 %v364
        %v466 = vunpack.c.h.b16 %v364
        %v467 = vunpack.c.l.b16 %v365
        %v468 = vunpack.c.h.b16 %v365
        %v469 = vunpack.c.l.b16 %v366
        %v470 = vunpack.c.h.b16 %v366
        %v471 = vunpack.c.l.b16 %v367
        %v472 = vunpack.c.h.b16 %v367
        %v473 = vunpack.c.l.b16 %v368
        %v474 = vunpack.c.h.b16 %v368
        %v475 = vunpack.c.l.b16 %v369
        %v476 = vunpack.c.h.b16 %v369
        %v477 = vunpack.c.l.b16 %v370
        %v478 = vunpack.c.h.b16 %v370
        %v479 = vunpack.c.l.b16 %v371
        %v480 = vunpack.c.h.b16 %v371
        %v481 = vunpack.c.l.b16 %v372
        %v482 = vunpack.c.h.b16 %v372
        %v483 = vunpack.c.l.b16 %v373
        %v484 = vunpack.c.h.b16 %v373
        %v485 = vunpack.c.l.b16 %v374
        %v486 = vunpack.c.h.b16 %v374
        %v487 = vunpack.c.l.b16 %v375
        %v488 = vunpack.c.h.b16 %v375
        %v489 = vunpack.c.l.b16 %v376
        %v490 = vunpack.c.h.b16 %v376
        %v491 = vunpack.c.l.b16 %v377
        %v492 = vunpack.c.h.b16 %v377
        %v493 = vunpack.c.l.b16 %v378
        %v494 = vunpack.c.h.b16 %v378
        %v495 = vpack.c.b16 %v433, %v431
        %v496 = vpack.c.b16 %v434, %v432
        %v497 = vpack.c.b16 %v437, %v435
        %v498 = vpack.c.b16 %v438, %v436
        %v499 = vpack.c.b16 %v441, %v439
        %v500 = vpack.c.b16 %v442, %v440
        %v501 = vpack.c.b16 %v445, %v443
        %v502 = vpack.c.b16 %v446, %v444
        %v503 = vpack.c.b16 %v449, %v447
        %v504 = vpack.c.b16 %v450, %v448
        %v505 = vpack.c.b16 %v453, %v451
        %v506 = vpack.c.b16 %v454, %v452
        %v507 = vpack.c.b16 %v457, %v455
        %v508 = vpack.c.b16 %v458, %v456
        %v509 = vpack.c.b16 %v461, %v459
        %v510 = vpack.c.b16 %v462, %v460
        %v511 = vpack.c.b16 %v465, %v463
        %v512 = vpack.c.b16 %v466, %v464
        %v513 = vpack.c.b16 %v469, %v467
        %v514 = vpack.c.b16 %v470, %v468
        %v515 = vpack.c.b16 %v473, %v471
        %v516 = vpack.c.b16 %v474, %v472
        %v517 = vpack.c.b16 %v477, %v475
        %v518 = vpack.c.b16 %v478, %v476
        %v519 = vpack.c.b16 %v481, %v479
        %v520 = vpack.c.b16 %v482, %v480
        %v521 = vpack.c.b16 %v485, %v483
        %v522 = vpack.c.b16 %v486, %v484
        %v523 = vpack.c.b16 %v489, %v487
        %v524 = vpack.c.b16 %v490, %v488
        %v525 = vpack.c.b16 %v493, %v491
        %v526 = vpack.c.b16 %v494, %v492
        %559 = vmatprep.subr.bf16.mxu0 %v496
        %560 = vmatpush1.bf16.xpose.msra.mxu0 %v495
        %561 = vmatprep.subr.bf16.mxu0 %v498
        %562 = vmatpush1.bf16.xpose.msra.mxu0 %v497
        %563 = vmatprep.subr.bf16.mxu0 %v500
        %564 = vmatpush1.bf16.xpose.msra.mxu0 %v499
        %565 = vmatprep.subr.bf16.mxu0 %v502
        %566 = vmatpush1.bf16.xpose.msra.mxu0 %v501
        %567 = vmatprep.subr.bf16.mxu0 %v504
        %568 = vmatpush1.bf16.xpose.msra.mxu0 %v503
        %569 = vmatprep.subr.bf16.mxu0 %v506
        %570 = vmatpush1.bf16.xpose.msra.mxu0 %v505
        %571 = vmatprep.subr.bf16.mxu0 %v508
        %572 = vmatpush1.bf16.xpose.msra.mxu0 %v507
        %573 = vmatprep.subr.bf16.mxu0 %v510
        %574 = vmatpush1.bf16.xpose.msra.mxu0 %v509
        %575 = vmatprep.subr.bf16.mxu0 %v512
        %576 = vmatpush1.bf16.xpose.msra.mxu0 %v511
        %577 = vmatprep.subr.bf16.mxu0 %v514
        %578 = vmatpush1.bf16.xpose.msra.mxu0 %v513
        %579 = vmatprep.subr.bf16.mxu0 %v516
        %580 = vmatpush1.bf16.xpose.msra.mxu0 %v515
        %581 = vmatprep.subr.bf16.mxu0 %v518
        %582 = vmatpush1.bf16.xpose.msra.mxu0 %v517
        %583 = vmatprep.subr.bf16.mxu0 %v520
        %584 = vmatpush1.bf16.xpose.msra.mxu0 %v519
        %585 = vmatprep.subr.bf16.mxu0 %v522
        %586 = vmatpush1.bf16.xpose.msra.mxu0 %v521
        %587 = vmatprep.subr.bf16.mxu0 %v524
        %588 = vmatpush1.bf16.xpose.msra.mxu0 %v523
        %589 = vmatprep.subr.bf16.mxu0 %v526
        %590 = vmatpush1.bf16.xpose.msra.mxu0 %v525
        %591 = vmatprep.mubr.bf16.mxu0 %v392
        %592 = vmatmul.mubr.bf16.gmra.mrb[0].mxu0 %v391
        %v593 = vpop.f32.mrb[0].mxu0
        %v594 = vadd.f32 0.0, %v593
        %v595 = vpop.f32.mrb[0].mxu0
        %v596 = vadd.f32 0.0, %v595
        %v597 = vpop.f32.mrb[0].mxu0
        %v598 = vadd.f32 0.0, %v597
        %v599 = vpop.f32.mrb[0].mxu0
        %v600 = vadd.f32 0.0, %v599
        %601 = vmatprep.mubr.bf16.mxu0 %v394
        %602 = vmatmul.mubr.bf16.gmra.mrb[0].mxu0 %v393
        %v603 = vpop.f32.mrb[0].mxu0
        %v604 = vadd.f32 0.0, %v603
        %v605 = vpop.f32.mrb[0].mxu0
        %v606 = vadd.f32 0.0, %v605
        %v607 = vpop.f32.mrb[0].mxu0
        %v608 = vadd.f32 0.0, %v607
        %v609 = vpop.f32.mrb[0].mxu0
        %v610 = vadd.f32 0.0, %v609
        %611 = vdwg.mxu0
        %v612 = vadd.f32 %v335, %v594
        %v613 = vadd.f32 %v336, %v596
        %v614 = vadd.f32 %v337, %v598
        %v615 = vadd.f32 %v338, %v600
        %v616 = vadd.f32 %v339, %v604
        %v617 = vadd.f32 %v340, %v606
        %v618 = vadd.f32 %v341, %v608
        %v619 = vadd.f32 %v342, %v610
        %620 = vst [vmem:[#allocation2] sm:$0xff] %v612
        %621 = vst [vmem:[#allocation2 + $0x8] sm:$0xff] %v613
        %622 = vst [vmem:[#allocation2 + $0x10] sm:$0xff] %v614
        %623 = vst [vmem:[#allocation2 + $0x18] sm:$0xff] %v615
        %624 = vst [vmem:[#allocation2 + $0x20] sm:$0xff] %v616
        %625 = vst [vmem:[#allocation2 + $0x28] sm:$0xff] %v617
        %626 = vst [vmem:[#allocation2 + $0x30] sm:$0xff] %v618
        %627 = vst [vmem:[#allocation2 + $0x38] sm:$0xff] %v619
        %p628 = scmp.lt.s32.totalorder %s29, 2
        %p629 = pnand %p323, %p628
        %p630 = pneg %p629
        // Predicated region
        $region57: #{tpu_custom_call.1} parent=35 // pred_check
          _
        $region58: #{tpu_custom_call.1} parent=35 // pred_check_branch
          %632 = sbr.rel (%p629) target = $region60
        $region59: #{tpu_custom_call.1} parent=35 // pred_region
          %v633 = vld [vmem:[#allocation8] sm:$0xff]
          %v634 = vld [vmem:[#allocation8 + $0x8] sm:$0xff]
          %v635 = vld [vmem:[#allocation8 + $0x10] sm:$0xff]
          %v636 = vld [vmem:[#allocation8 + $0x18] sm:$0xff]
          %v637 = vld [vmem:[#allocation9] sm:$0xff]
          %v638 = vld [vmem:[#allocation9 + $0x8] sm:$0xff]
          %v639 = vld [vmem:[#allocation9 + $0x10] sm:$0xff]
          %v640 = vld [vmem:[#allocation9 + $0x18] sm:$0xff]
          %v641 = vld [vmem:[#allocation2] sm:$0xff]
          %v642 = vld [vmem:[#allocation2 + $0x8] sm:$0xff]
          %v643 = vld [vmem:[#allocation2 + $0x10] sm:$0xff]
          %v644 = vld [vmem:[#allocation2 + $0x18] sm:$0xff]
          %v645 = vld [vmem:[#allocation2 + $0x20] sm:$0xff]
          %v646 = vld [vmem:[#allocation2 + $0x28] sm:$0xff]
          %v647 = vld [vmem:[#allocation2 + $0x30] sm:$0xff]
          %v648 = vld [vmem:[#allocation2 + $0x38] sm:$0xff]
          %v649 = vmul.f32 %v641, %v633
          %v650 = vmul.f32 %v643, %v634
          %v651 = vmul.f32 %v645, %v635
          %v652 = vmul.f32 %v647, %v636
          %653 = vrot.lane.b32.xlu0 %v641, 64
          %v654 = vpop.permute.xlu0 %653
          %655 = vrot.lane.b32.xlu0 %v643, 64
          %v656 = vpop.permute.xlu0 %655
          %657 = vrot.lane.b32.xlu0 %v645, 64
          %v658 = vpop.permute.xlu0 %657
          %659 = vrot.lane.b32.xlu0 %v647, 64
          %v660 = vpop.permute.xlu0 %659
          %v661 = vmul.f32 %v654, %v637
          %v662 = vmul.f32 %v656, %v638
          %v663 = vmul.f32 %v658, %v639
          %v664 = vmul.f32 %v660, %v640
          %v665 = vadd.f32 %v649, %v661
          %v666 = vadd.f32 %v650, %v662
          %v667 = vadd.f32 %v651, %v663
          %v668 = vadd.f32 %v652, %v664
          %v669 = vpack.c.bf16 %v666, %v665
          %v670 = vpack.c.bf16 %v668, %v667
          %v673 = vunpack.c.l.b16 %v669
          %v674 = vunpack.c.h.b16 %v669
          %v675 = vunpack.c.l.b16 %v670
          %v676 = vunpack.c.h.b16 %v670
          %v677 = vpack.c.b16 %v673, %v673
          %v678 = vpack.c.b16 %v674, %v674
          %v679 = vpack.c.b16 %v675, %v675
          %v680 = vpack.c.b16 %v676, %v676
          %685 = vst [vmem:[%s314] sm:$0xf] %v677
          %686 = vst [vmem:[%s314 + $0x8] sm:$0xf] %v678
          %687 = vst [vmem:[%s314 + $0x10] sm:$0xf] %v679
          %688 = vst [vmem:[%s314 + $0x18] sm:$0xf] %v680
          %v689 = vmul.f32 %v642, %v633
          %v690 = vmul.f32 %v644, %v634
          %v691 = vmul.f32 %v646, %v635
          %v692 = vmul.f32 %v648, %v636
          %693 = vrot.lane.b32.xlu0 %v642, 64
          %v694 = vpop.permute.xlu0 %693
          %695 = vrot.lane.b32.xlu0 %v644, 64
          %v696 = vpop.permute.xlu0 %695
          %697 = vrot.lane.b32.xlu0 %v646, 64
          %v698 = vpop.permute.xlu0 %697
          %699 = vrot.lane.b32.xlu0 %v648, 64
          %v700 = vpop.permute.xlu0 %699
          %v701 = vmul.f32 %v694, %v637
          %v702 = vmul.f32 %v696, %v638
          %v703 = vmul.f32 %v698, %v639
          %v704 = vmul.f32 %v700, %v640
          %v705 = vadd.f32 %v689, %v701
          %v706 = vadd.f32 %v690, %v702
          %v707 = vadd.f32 %v691, %v703
          %v708 = vadd.f32 %v692, %v704
          %v709 = vpack.c.bf16 %v706, %v705
          %v710 = vpack.c.bf16 %v708, %v707
          %v713 = vunpack.c.l.b16 %v709
          %v714 = vunpack.c.h.b16 %v709
          %v715 = vunpack.c.l.b16 %v710
          %v716 = vunpack.c.h.b16 %v710
          %v717 = vpack.c.b16 %v713, %v713
          %v718 = vpack.c.b16 %v714, %v714
          %v719 = vpack.c.b16 %v715, %v715
          %v720 = vpack.c.b16 %v716, %v716
          %725 = vst [vmem:[%s314 + $0x4] sm:$0xf] %v717
          %726 = vst [vmem:[%s314 + $0xc] sm:$0xf] %v718
          %727 = vst [vmem:[%s314 + $0x14] sm:$0xf] %v719
          %728 = vst [vmem:[%s314 + $0x1c] sm:$0xf] %v720
        $region60: #{tpu_custom_call.1} parent=35 // pred_fallthru
          _
        %p729 = scmp.ge.s32.totalorder %s29, 2
        %p730 = pnand %p323, %p729
        %p731 = pneg %p730
        // Predicated region
        $region61: #{tpu_custom_call.1} parent=35 // pred_check
          _
        $region62: #{tpu_custom_call.1} parent=35 // pred_check_branch
          %733 = sbr.rel (%p730) target = $region64
        $region63: #{tpu_custom_call.1} parent=35 // pred_region
          %v734 = vld [vmem:[#allocation2] sm:$0xff]
          %v735 = vld [vmem:[#allocation2 + $0x8] sm:$0xff]
          %v736 = vld [vmem:[#allocation2 + $0x10] sm:$0xff]
          %v737 = vld [vmem:[#allocation2 + $0x18] sm:$0xff]
          %v738 = vld [vmem:[#allocation2 + $0x20] sm:$0xff]
          %v739 = vld [vmem:[#allocation2 + $0x28] sm:$0xff]
          %v740 = vld [vmem:[#allocation2 + $0x30] sm:$0xff]
          %v741 = vld [vmem:[#allocation2 + $0x38] sm:$0xff]
          %v742 = vpack.c.bf16 %v736, %v734
          %v743 = vpack.c.bf16 %v737, %v735
          %v744 = vpack.c.bf16 %v740, %v738
          %v745 = vpack.c.bf16 %v741, %v739
          %v750 = vunpack.c.l.b16 %v742
          %v751 = vunpack.c.l.b16 %v743
          %v752 = vunpack.c.h.b16 %v742
          %v753 = vunpack.c.h.b16 %v743
          %v754 = vunpack.c.l.b16 %v744
          %v755 = vunpack.c.l.b16 %v745
          %v756 = vunpack.c.h.b16 %v744
          %v757 = vunpack.c.h.b16 %v745
          %v758 = vpack.c.b16 %v751, %v750
          %v759 = vpack.c.b16 %v753, %v752
          %v760 = vpack.c.b16 %v755, %v754
          %v761 = vpack.c.b16 %v757, %v756
          %766 = vst [vmem:[%s314] sm:$0xff] %v758
          %767 = vst [vmem:[%s314 + $0x8] sm:$0xff] %v759
          %768 = vst [vmem:[%s314 + $0x10] sm:$0xff] %v760
          %769 = vst [vmem:[%s314 + $0x18] sm:$0xff] %v761
        $region64: #{tpu_custom_call.1} parent=35 // pred_fallthru
          _
        %s770 = sand.u32 %s160, 1
        %s771 = scalar_lea.sflag [#allocation5], %s770
        %s772 = sand.u32 %s160, 1
        %s773 = smul.addr %s772, 32
        %s774 = scalar_lea.vmem [#allocation11], %s773
        // Predicated region
        $region65: #{tpu_custom_call.1} parent=35 // pred_check
          %p775 = pneg %p170
        $region66: #{tpu_custom_call.1} parent=35 // pred_check_branch
          %777 = sbr.rel (%p775) target = $region68
        $region67: #{tpu_custom_call.1} parent=35 // pred_region
          %s778 = smul.u32 4, %s28
          %s779 = smul.u32 2, %s29
          %s781 = ssub.s32 512, 512
          %782 = vsyncadd %s771, %s781
          %s783 = smul.addr %s778, 6
          %s784 = sadd.s32 %s779, %s783
          %s785 = smul.addr %s784, 64
          %s786 = scalar_lea.hbm %s4, %s785
          %s787 = sshll.u32 %s774, 4
          %s788 = int_to_ptr.vmem [resolvable:$true] %s787
          %793 = dma.vmem_to_hbm [thread:$0]  %s788, 512, %s786, %s771, 128, 384, 8
        $region68: #{tpu_custom_call.1} parent=35 // pred_fallthru
          _
      $region36: #{tpu_custom_call.1} parent=5 // pred_fallthru
        _
      %p794 = scmp.le.s32.totalorder 2, %s18
      // Predicated region
      $region69: #{tpu_custom_call.1} parent=5 // pred_check
        %p795 = pneg %p794
      $region70: #{tpu_custom_call.1} parent=5 // pred_check_branch
        %797 = sbr.rel (%p795) target = $region72
      $region71: #{tpu_custom_call.1} parent=5 // pred_region
        %s798 = ssub.s32 %s18, 2
        // Predicated region
        $region73: #{tpu_custom_call.1} parent=71 // pred_check
          %p799 = pneg %p176
        $region74: #{tpu_custom_call.1} parent=71 // pred_check_branch
          %801 = sbr.rel (%p799) target = $region76
        $region75: #{tpu_custom_call.1} parent=71 // pred_region
          %s802 = sand.u32 %s161, 1
          %s803 = scalar_lea.sflag [#allocation5], %s802
          %s804 = sand.u32 %s161, 1
          %s805 = smul.addr %s804, 32
          %s806 = scalar_lea.vmem [#allocation11], %s805
          %807 = dma.done %s803, 512
        $region76: #{tpu_custom_call.1} parent=71 // pred_fallthru
          _
      $region72: #{tpu_custom_call.1} parent=5 // pred_fallthru
        _
    $region6: #{tpu_custom_call.1} parent=1 // loop_footer
      %s22 = sadd.s32 1, %s18
    $region7: #{tpu_custom_call.1} parent=1 // loop_footer_branch
      %17 = sbr.rel target = $region3
    $region8: #{tpu_custom_call.1} parent=1 // loop_exit
      _
    %808 = vsyncpa [#allocation4], 1
    %s809 = scalar_lea.sflag [#allocation4], 1
    %810 = vsyncpa %s809, 1
    %811 = vsyncpa [#allocation7], 1
    %s812 = scalar_lea.sflag [#allocation7], 1
    %813 = vsyncpa %s812, 1
    %814 = vsyncpa [#allocation10], 1
    %815 = vsyncpa [#allocation5], 1
    %s816 = scalar_lea.sflag [#allocation5], 1
    %817 = vsyncpa %s816, 1

</llo_original>
